<compile_context>
chip_gen: v6e
topology: v6e:2x2x1
jax: 0.10.0
libtpu: 0.0.40
codegen_flags: <defaults>
</compile_context>

<pallas_src>
import jax
import jax.numpy as jnp
from jax.experimental import pallas as pl
from jax.experimental.pallas import tpu as pltpu


def _round_up(n: int, m: int) -> int:
    return ((n + m - 1) // m) * m


def _mlp_kernel(x_ref, w1_ref, b1_ref, w2_ref, b2_ref, o_ref):
    """One batch tile: (TB, I) -> (TB, 1).

    Layer 1 runs on the MXU with f32 accumulation; layer 2 (hidden -> 1) is a
    VPU multiply + XLU lane-reduction instead of an N=1 matmul that would waste
    127/128 (v5e) or 255/256 (v6e/v7x) MXU columns and pay full push/pop latency.
    """
    # Layer 1: (TB, I) @ (I, H) on the MXU, f32 accumulate regardless of input dtype.
    h = jnp.dot(x_ref[...], w1_ref[...], preferred_element_type=jnp.float32)
    h = jnp.maximum(h + b1_ref[...], 0.0)                      # bias + ReLU (VPU, f32)

    # Layer 2: elementwise * (1, H) weight row, reduce over the hidden (lane) axis.
    z = jnp.sum(h * w2_ref[...], axis=-1, keepdims=True)       # (TB, 1)
    z = z + b2_ref[0]                                          # scalar bias from SMEM

    # Sigmoid: exp goes to the EUP slot; use approx=True on the reciprocal once the
    # kernel is compute-bound (kept exact here for the tight correctness check).
    y = pl.reciprocal(1.0 + jnp.exp(-z), approx=False)
    o_ref[...] = y.astype(o_ref.dtype)


def logits_ensemble_forward(x, w1, b1, w2, b2, *, block_b=512, use_bf16_matmul=False):
    """Fused forward pass of the two-layer logits-ensemble MLP.

    Args:
      x:  (B, input_size) float32 input logits.
      w1: (input_size, hidden) first-layer weight (transpose of torch's (H, I) layout).
      b1: (hidden,) or (1, hidden) first-layer bias.
      w2: (1, hidden) second-layer weight row (torch-native Linear(hidden, 1).weight).
      b2: scalar / (1,) second-layer bias.
      block_b: batch tile; rounded to a multiple of 8 (f32 sublane), default 512 so each
        grid step amortizes the per-step pipeline overhead once the batch is large.
      use_bf16_matmul: cast x / w1 to bfloat16 for the MXU (native on v6e/v7x, halves
        HBM traffic); accumulation and all elementwise math stay float32.

    Returns: (B, 1) float32 probabilities.
    """
    B, I = x.shape
    H = w1.shape[1]
    assert w1.shape == (I, H)

    b1 = jnp.asarray(b1, jnp.float32).reshape(1, H)
    w2 = jnp.asarray(w2, jnp.float32).reshape(1, H)
    b2 = jnp.asarray(b2, jnp.float32).reshape(1)

    # Batch tile: multiple of 8; pad B up to a whole number of tiles.
    tb = min(_round_up(block_b, 8), _round_up(B, 8))
    n_tiles = pl.cdiv(B, tb)
    b_pad = n_tiles * tb
    if b_pad != B:
        x = jnp.pad(x, ((0, b_pad - B), (0, 0)))

    if use_bf16_matmul:
        x = x.astype(jnp.bfloat16)
        w1 = jnp.asarray(w1, jnp.float32).astype(jnp.bfloat16)
    else:
        x = x.astype(jnp.float32)
        w1 = jnp.asarray(w1, jnp.float32)

    out = pl.pallas_call(
        _mlp_kernel,
        out_shape=jax.ShapeDtypeStruct((b_pad, 1), jnp.float32),
        grid=(n_tiles,),
        in_specs=[
            pl.BlockSpec((tb, I), lambda i: (i, 0)),             # x: tiled over batch
            pl.BlockSpec((I, H), lambda i: (0, 0)),              # w1: resident
            pl.BlockSpec((1, H), lambda i: (0, 0)),              # b1: resident
            pl.BlockSpec((1, H), lambda i: (0, 0)),              # w2 row: resident
            pl.BlockSpec(memory_space=pltpu.MemorySpace.SMEM),   # b2: scalar in SMEM
        ],
        out_specs=pl.BlockSpec((tb, 1), lambda i: (i, 0)),
        compiler_params=pltpu.CompilerParams(
            # Batch tiles are independent -> shard the grid across TensorCores
            # (2 TCs/chip on v7x; harmless elsewhere).
            dimension_semantics=("parallel",),
        ),
    )(x, w1, b1, w2, b2)
    return out[:B]


def init_params(key, input_size, hidden_size):
    """Deterministic init mimicking nn.Linear's U(-1/sqrt(fan_in), 1/sqrt(fan_in))."""
    k1, k2, k3, k4 = jax.random.split(key, 4)
    bound1 = 1.0 / jnp.sqrt(input_size)
    bound2 = 1.0 / jnp.sqrt(hidden_size)
    w1 = jax.random.uniform(k1, (input_size, hidden_size), jnp.float32,
                            minval=-bound1, maxval=bound1)
    b1 = jax.random.uniform(k2, (1, hidden_size), jnp.float32,
                            minval=-bound1, maxval=bound1)
    w2 = jax.random.uniform(k3, (1, hidden_size), jnp.float32,   # torch Linear(H,1).weight layout
                            minval=-bound2, maxval=bound2)
    b2 = jax.random.uniform(k4, (1,), jnp.float32,
                            minval=-bound2, maxval=bound2)
    return w1, b1, w2, b2


if __name__ == "__main__":
    input_size = 16    # total number of input logits from different experiments
    hidden_size = 32

    key = jax.random.PRNGKey(0)
    kx, kp, kx2 = jax.random.split(key, 3)
    w1, b1, w2, b2 = init_params(kp, input_size, hidden_size)

    def reference(xv):
        h = jnp.maximum(xv @ w1 + b1, 0.0)
        return jax.nn.sigmoid(h @ w2.T + b2.reshape(1, 1))

    # Small batch, matching the module's typical use.
    x_small = jax.random.normal(kx, (8, input_size), jnp.float32)
    out_small = jax.block_until_ready(logits_ensemble_forward(x_small, w1, b1, w2, b2))
    assert out_small.shape == (8, 1)
    assert jnp.allclose(out_small, reference(x_small), atol=1e-5, rtol=1e-5)

    # Larger, non-tile-multiple batch: exercises the batch grid, zero padding,
    # double-buffered x tiles and the "parallel" dimension semantics.
    x_big = jax.random.normal(kx2, (1000, input_size), jnp.float32)
    out_big = jax.block_until_ready(logits_ensemble_forward(x_big, w1, b1, w2, b2))
    assert out_big.shape == (1000, 1)
    assert jnp.allclose(out_big, reference(x_big), atol=1e-5, rtol=1e-5)

    # bf16 MXU-input fast path (v6e/v7x); elementwise math stays f32.
    out_bf16 = jax.block_until_ready(
        logits_ensemble_forward(x_big, w1, b1, w2, b2, use_bf16_matmul=True))
    assert out_bf16.shape == (1000, 1)
    assert jnp.allclose(out_bf16, reference(x_big), atol=5e-2, rtol=5e-2)

    print("KERNEL_OK")
</pallas_src>

<mosaic_0001>
module attributes {stable_mosaic.version = 11 : i64} {
  func.func @_mlp_kernel(%arg0: i32, %arg1: memref<8x16xf32, #tpu.memory_space<vmem>>, %arg2: memref<16x32xf32, #tpu.memory_space<vmem>>, %arg3: memref<1x32xf32, #tpu.memory_space<vmem>>, %arg4: memref<1x32xf32, #tpu.memory_space<vmem>>, %arg5: memref<1xf32, #tpu.memory_space<smem>>, %arg6: memref<8x1xf32, #tpu.memory_space<vmem>>) attributes {dimension_semantics = [#tpu.dimension_semantics<parallel>], iteration_bounds = array<i64: 1>, scalar_prefetch = 0 : i64, scratch_operands = 0 : i64, tpu.core_type = #tpu.core_type<tc>, window_params = [{transform_indices = @transform_0, window_bounds = array<i64: 8, 16>}, {pipeline_mode = #tpu.pipeline_mode<synchronous>, transform_indices = @transform_1, window_bounds = array<i64: 16, 32>}, {pipeline_mode = #tpu.pipeline_mode<synchronous>, transform_indices = @transform_2, window_bounds = array<i64: 1, 32>}, {pipeline_mode = #tpu.pipeline_mode<synchronous>, transform_indices = @transform_3, window_bounds = array<i64: 1, 32>}, {transform_indices = @transform_4, window_bounds = array<i64: 1>}, {transform_indices = @transform_5, window_bounds = array<i64: 8, 1>}]} {
    %c0 = arith.constant 0 : index
    %c0_0 = arith.constant 0 : index
    %0 = vector.load %arg1[%c0, %c0_0] : memref<8x16xf32, #tpu.memory_space<vmem>>, vector<8x16xf32>
    %c0_1 = arith.constant 0 : index
    %c0_2 = arith.constant 0 : index
    %1 = vector.load %arg2[%c0_1, %c0_2] : memref<16x32xf32, #tpu.memory_space<vmem>>, vector<16x32xf32>
    %cst = arith.constant dense<0.000000e+00> : vector<8x32xf32>
    %2 = tpu.matmul %0, %1, %cst {dimension_numbers = #tpu.dot_dimension_numbers<[1], [0], [0], [1], [0, 0, 1, 1], [], []>} : vector<8x16xf32>, vector<16x32xf32>, vector<8x32xf32> -> vector<8x32xf32>
    %c0_3 = arith.constant 0 : index
    %c0_4 = arith.constant 0 : index
    %3 = vector.load %arg3[%c0_3, %c0_4] : memref<1x32xf32, #tpu.memory_space<vmem>>, vector<1x32xf32>
    %4 = vector.broadcast %3 : vector<1x32xf32> to vector<8x32xf32>
    %5 = arith.addf %2, %4 : vector<8x32xf32>
    %cst_5 = arith.constant 0.000000e+00 : f32
    %6 = vector.broadcast %cst_5 : f32 to vector<8x32xf32>
    %7 = arith.maximumf %5, %6 : vector<8x32xf32>
    %c0_6 = arith.constant 0 : index
    %c0_7 = arith.constant 0 : index
    %8 = vector.load %arg4[%c0_6, %c0_7] : memref<1x32xf32, #tpu.memory_space<vmem>>, vector<1x32xf32>
    %9 = vector.broadcast %8 : vector<1x32xf32> to vector<8x32xf32>
    %10 = arith.mulf %7, %9 : vector<8x32xf32>
    %cst_8 = arith.constant dense<0.000000e+00> : vector<8xf32>
    %11 = vector.multi_reduction <add>, %10, %cst_8 [1] : vector<8x32xf32> to vector<8xf32>
    %12 = vector.shape_cast %11 : vector<8xf32> to vector<8x1xf32>
    %c0_9 = arith.constant 0 : index
    %13 = memref.load %arg5[%c0_9] : memref<1xf32, #tpu.memory_space<smem>>
    %14 = vector.broadcast %13 : f32 to vector<8x1xf32>
    %15 = arith.addf %12, %14 : vector<8x1xf32>
    %cst_10 = arith.constant 0.000000e+00 : f32
    %16 = vector.broadcast %cst_10 : f32 to vector<8x1xf32>
    %17 = arith.subf %16, %15 : vector<8x1xf32>
    %18 = math.exp %17 : vector<8x1xf32>
    %cst_11 = arith.constant 1.000000e+00 : f32
    %19 = vector.broadcast %cst_11 : f32 to vector<8x1xf32>
    %20 = arith.addf %19, %18 : vector<8x1xf32>
    %21 = tpu.reciprocal %20 : vector<8x1xf32> -> vector<8x1xf32>
    %c0_12 = arith.constant 0 : index
    %c0_13 = arith.constant 0 : index
    %22 = vector.load %arg6[%c0_12, %c0_13] : memref<8x1xf32, #tpu.memory_space<vmem>>, vector<8x1xf32>
    tpu.vector_store %arg6[%c0_12, %c0_13], %21 {strides = array<i32>} : memref<8x1xf32, #tpu.memory_space<vmem>>, vector<8x1xf32>,
    return
  }
  func.func @transform_0(%arg0: i32) -> (i32, i32) {
    %c0_i32 = arith.constant 0 : i32
    %c0_i32_0 = arith.constant 0 : i32
    return %arg0, %c0_i32 : i32, i32
  }
  func.func @transform_1(%arg0: i32) -> (i32, i32) {
    %c0_i32 = arith.constant 0 : i32
    %c0_i32_0 = arith.constant 0 : i32
    %c0_i32_1 = arith.constant 0 : i32
    return %c0_i32, %c0_i32_0 : i32, i32
  }
  func.func @transform_2(%arg0: i32) -> (i32, i32) {
    %c0_i32 = arith.constant 0 : i32
    %c0_i32_0 = arith.constant 0 : i32
    %c0_i32_1 = arith.constant 0 : i32
    return %c0_i32, %c0_i32_0 : i32, i32
  }
  func.func @transform_3(%arg0: i32) -> (i32, i32) {
    %c0_i32 = arith.constant 0 : i32
    %c0_i32_0 = arith.constant 0 : i32
    %c0_i32_1 = arith.constant 0 : i32
    return %c0_i32, %c0_i32_0 : i32, i32
  }
  func.func @transform_4(%arg0: i32) -> i32 {
    %c0_i32 = arith.constant 0 : i32
    %c0_i32_0 = arith.constant 0 : i32
    return %c0_i32 : i32
  }
  func.func @transform_5(%arg0: i32) -> (i32, i32) {
    %c0_i32 = arith.constant 0 : i32
    %c0_i32_0 = arith.constant 0 : i32
    return %arg0, %c0_i32 : i32, i32
  }
}

</mosaic_0001>

<llo_original>
// kernel: tpu_custom_call.1
$region0: #{tpu_custom_call.1}
  #allocation0 [shape = 'u32[]', space=smem, size = 0x4, offset = 0x4, fixed_abs, tag = 'smem constant byte address 0x4 - core index']
  #allocation1 [shape = 'u32[144,128]{1,0:T(1,128)}', space=vmem, size = 0x12000, scoped, tag = 'internal scratch']
  #allocation2 [shape = 'f32[1]{0:T(128)S(6)}', space=smem, size = 0x200, scoped, tag = 'scoped memory for tpu_custom_call.1']
  %s0 = inlined_call_operand.hbm [shape: f32[8,16], index: 0, kind: input, shape index: {}]
  %s1 = inlined_call_operand.hbm [shape: f32[16,32], index: 1, kind: input, shape index: {}]
  %s2 = inlined_call_operand.vmem [shape: f32[1,32], index: 2, kind: input, shape index: {}]
  %s3 = inlined_call_operand.vmem [shape: f32[1,32], index: 3, kind: input, shape index: {}]
  %s4 = inlined_call_operand.<no memory space> [shape: f32[1], index: 4, kind: input, shape index: {}]
  %s5 = inlined_call_operand.vmem [shape: f32[8,1], index: 5, kind: output, shape index: {}]
  %s6 = sld [smem:[#allocation0]]
  $region38: #{tpu_custom_call.1} parent=0
    _
  %s8 = ssub.s32 1, %s6
  %s9 = scalar_select 0, %s8, %s6
  %10 = sst [smem:[#allocation2]] %s4
  $region1: #{tpu_custom_call.1} parent=0
    #allocation3 [shape = 'u8[4096]{0}', space=vmem, size = 0x1000, scoped, tag = 'input window, operand 0, single buffered']
    #allocation4 [shape = 's32[1]{0}', space=sflag, size = 0x4, scoped, tag = 'scoped memory for tpu_custom_call.1']
    #allocation5 [shape = 'u8[8192]{0}', space=vmem, size = 0x2000, scoped, tag = 'input window, operand 1, single buffered']
    #allocation6 [shape = 's32[1]{0}', space=sflag, size = 0x4, scoped, tag = 'scoped memory for tpu_custom_call.1']
    %11 = vsyncpa [#allocation4], 0
    %12 = vsyncpa [#allocation6], 0
    // Predicated region
    $region2: #{tpu_custom_call.1} parent=1 // pred_check
      _
    $region3: #{tpu_custom_call.1} parent=1 // pred_check_branch
      %14 = sbr.rel (0) target = $region5
    $region4: #{tpu_custom_call.1} parent=1 // pred_region
      %s16 = ssub.s32 128, 128
      %17 = vsyncadd [#allocation4], %s16
      %s19 = sshll.u32 [#allocation3], 4
      %s20 = int_to_ptr.vmem [resolvable:$true] %s19
      %22 = dma.hbm_to_vmem [thread:$0]  %s0, 128, %s20, [#allocation4]
    $region5: #{tpu_custom_call.1} parent=1 // pred_fallthru
      _
    // Predicated region
    $region6: #{tpu_custom_call.1} parent=1 // pred_check
      _
    $region7: #{tpu_custom_call.1} parent=1 // pred_check_branch
      %24 = sbr.rel (0) target = $region9
    $region8: #{tpu_custom_call.1} parent=1 // pred_region
      %s26 = ssub.s32 256, 256
      %27 = vsyncadd [#allocation6], %s26
      %s28 = sshll.u32 [#allocation5], 4
      %s29 = int_to_ptr.vmem [resolvable:$true] %s28
      %34 = dma.hbm_to_vmem [thread:$0]  %s1, 256, %s29, [#allocation6], 128, 128, 8
    $region9: #{tpu_custom_call.1} parent=1 // pred_fallthru
      _
    // Predicated region
    $region10: #{tpu_custom_call.1} parent=1 // pred_check
      _
    $region11: #{tpu_custom_call.1} parent=1 // pred_check_branch
      %36 = sbr.rel (0) target = $region13
    $region12: #{tpu_custom_call.1} parent=1 // pred_region
      _
    $region13: #{tpu_custom_call.1} parent=1 // pred_fallthru
      _
    // Predicated region
    $region14: #{tpu_custom_call.1} parent=1 // pred_check
      _
    $region15: #{tpu_custom_call.1} parent=1 // pred_check_branch
      %38 = sbr.rel (0) target = $region17
    $region16: #{tpu_custom_call.1} parent=1 // pred_region
      _
    $region17: #{tpu_custom_call.1} parent=1 // pred_fallthru
      _
    // Predicated region
    $region18: #{tpu_custom_call.1} parent=1 // pred_check
      _
    $region19: #{tpu_custom_call.1} parent=1 // pred_check_branch
      %40 = sbr.rel (0) target = $region21
    $region20: #{tpu_custom_call.1} parent=1 // pred_region
      _
    $region21: #{tpu_custom_call.1} parent=1 // pred_fallthru
      _
    // Predicated region
    $region22: #{tpu_custom_call.1} parent=1 // pred_check
      _
    $region23: #{tpu_custom_call.1} parent=1 // pred_check_branch
      %42 = sbr.rel (0) target = $region25
    $region24: #{tpu_custom_call.1} parent=1 // pred_region
      %43 = dma.done [#allocation4], 128
    $region25: #{tpu_custom_call.1} parent=1 // pred_fallthru
      _
    // Predicated region
    $region26: #{tpu_custom_call.1} parent=1 // pred_check
      _
    $region27: #{tpu_custom_call.1} parent=1 // pred_check_branch
      %45 = sbr.rel (0) target = $region29
    $region28: #{tpu_custom_call.1} parent=1 // pred_region
      %46 = dma.done [#allocation6], 256
    $region29: #{tpu_custom_call.1} parent=1 // pred_fallthru
      _
    %v47 = vld [vmem:[#allocation3] sm:$0xff]
    %v48 = vld [vmem:[#allocation5] sm:$0xff]
    %v49 = vld [vmem:[#allocation5 + $0x8] sm:$0xff]
    %v50 = vld [vmem:[%s2] sm:$0x1]
    %v52 = vlaneseq
    %v53 = vshrl.u32 %v52, 7
    %v54 = vsub.s32 0, %v53
    %v55 = vrot.slane %v50, %v54
    %vm57 = vcmask 130048
    %v59 = vsel %vm57, %v47, 0
    %61 = vmatprep.subr.mxu0 0.0
    %62 = vmatpush1.msra.mxu0 0.0
    %63 = vmatprep.subr.mxu0 0.0
    %64 = vmatpush1.msra.mxu0 0.0
    %65 = vmatprep.subr.mxu0 0.0
    %66 = vmatpush1.msra.mxu0 0.0
    %67 = vmatprep.subr.mxu0 0.0
    %68 = vmatpush1.msra.mxu0 0.0
    %69 = vmatprep.subr.mxu0 0.0
    %70 = vmatpush1.msra.mxu0 0.0
    %71 = vmatprep.subr.mxu0 0.0
    %72 = vmatpush1.msra.mxu0 0.0
    %73 = vmatprep.subr.mxu0 0.0
    %74 = vmatpush1.msra.mxu0 0.0
    %75 = vmatprep.subr.mxu0 0.0
    %76 = vmatpush1.msra.mxu0 0.0
    %77 = vmatprep.subr.mxu0 0.0
    %78 = vmatpush1.msra.mxu0 0.0
    %79 = vmatprep.subr.mxu0 0.0
    %80 = vmatpush1.msra.mxu0 0.0
    %81 = vmatprep.subr.mxu0 0.0
    %82 = vmatpush1.msra.mxu0 0.0
    %83 = vmatprep.subr.mxu0 0.0
    %84 = vmatpush1.msra.mxu0 0.0
    %85 = vmatprep.subr.mxu0 0.0
    %86 = vmatpush1.msra.mxu0 0.0
    %87 = vmatprep.subr.mxu0 0.0
    %88 = vmatpush1.msra.mxu0 0.0
    %89 = vmatprep.subr.mxu0 0.0
    %90 = vmatpush1.msra.mxu0 %v49
    %91 = vmatprep.subr.mxu0 0.0
    %92 = vmatpush1.msra.mxu0 %v48
    %93 = vmatprep.subr.mxu0 0.0
    %94 = vmatpush2.msra.mxu0 0.0
    %95 = vmatprep.subr.mxu0 0.0
    %96 = vmatpush2.msra.mxu0 0.0
    %97 = vmatprep.subr.mxu0 0.0
    %98 = vmatpush2.msra.mxu0 0.0
    %99 = vmatprep.subr.mxu0 0.0
    %100 = vmatpush2.msra.mxu0 0.0
    %101 = vmatprep.subr.mxu0 0.0
    %102 = vmatpush2.msra.mxu0 0.0
    %103 = vmatprep.subr.mxu0 0.0
    %104 = vmatpush2.msra.mxu0 0.0
    %105 = vmatprep.subr.mxu0 0.0
    %106 = vmatpush2.msra.mxu0 0.0
    %107 = vmatprep.subr.mxu0 0.0
    %108 = vmatpush2.msra.mxu0 0.0
    %109 = vmatprep.subr.mxu0 0.0
    %110 = vmatpush2.msra.mxu0 0.0
    %111 = vmatprep.subr.mxu0 0.0
    %112 = vmatpush2.msra.mxu0 0.0
    %113 = vmatprep.subr.mxu0 0.0
    %114 = vmatpush2.msra.mxu0 0.0
    %115 = vmatprep.subr.mxu0 0.0
    %116 = vmatpush2.msra.mxu0 0.0
    %117 = vmatprep.subr.mxu0 0.0
    %118 = vmatpush2.msra.mxu0 0.0
    %119 = vmatprep.subr.mxu0 0.0
    %120 = vmatpush2.msra.mxu0 0.0
    %121 = vmatprep.subr.mxu0 0.0
    %122 = vmatpush2.msra.mxu0 0.0
    %123 = vmatprep.subr.mxu0 0.0
    %124 = vmatpush2.msra.mxu0 0.0
    %125 = vmatprep.mubr.f32.mxu0 0.0
    %126 = vmatmul.mubr.f32.gmra.mxu0 %v59
    %v127 = vpop.f32.mrf.mxu0
    %v128 = vadd.f32 %v55, %v127
    %v129 = vpop.f32.mrf.mxu0
    %130 = vdwg.mxu0
    %v131 = vmax.f32 %v128, 0.0
    %v132 = vld [vmem:[%s3] sm:$0x1]
    %v134 = vlaneseq
    %v135 = vshrl.u32 %v134, 7
    %v136 = vsub.s32 0, %v135
    %v137 = vrot.slane %v132, %v136
    %v139 = vmul.f32 %v131, %v137
    %vm140 = vcmask 261120
    %v141 = vsel %vm140, %v139, 0.0
    %142 = vadd.xlane.f32.xlu0 %v141
    %v143 = vpop.xlane.xlu0 %142
    %s144 = sld [smem:[#allocation2]]
    %v145 = vstv %s144
    %v146 = vadd.f32 %v143, %v145
    %v147 = vsub.f32 0.0, %v146
    %v148 = vmul.f32 %v147, 1.442695
    %v149 = vpow.pop %v148
    %v150 = vadd.f32 %v149, 1.0
    %v151 = vrcp.pop %v150
    %vm152 = vcmask 7168
    %153 = vst.msk [vmem:[%s5] sm:$0xff] %vm152, %v151
    // Predicated region
    $region30: #{tpu_custom_call.1} parent=1 // pred_check
      _
    $region31: #{tpu_custom_call.1} parent=1 // pred_check_branch
      %155 = sbr.rel (0) target = $region33
    $region32: #{tpu_custom_call.1} parent=1 // pred_region
      _
    $region33: #{tpu_custom_call.1} parent=1 // pred_fallthru
      _
    // Predicated region
    $region34: #{tpu_custom_call.1} parent=1 // pred_check
      _
    $region35: #{tpu_custom_call.1} parent=1 // pred_check_branch
      %157 = sbr.rel (0) target = $region37
    $region36: #{tpu_custom_call.1} parent=1 // pred_region
      _
    $region37: #{tpu_custom_call.1} parent=1 // pred_fallthru
      _
    %158 = vsyncpa [#allocation4], 1
    %159 = vsyncpa [#allocation6], 1

</llo_original>
